<compile_context>
chip_gen: v6e
topology: v6e:2x2x1
jax: 0.10.0
libtpu: 0.0.40
codegen_flags: <defaults>
</compile_context>

<pallas_src>
import functools

import jax
import jax.numpy as jnp
import numpy as np
from jax.experimental import pallas as pl
from jax.experimental.pallas import tpu as pltpu


# ----------------------------------------------------------------------------
# Hardware / layout helpers
# ----------------------------------------------------------------------------
def _vmem_capacity_bytes() -> int:
    try:
        return int(pltpu.get_tpu_info().vmem_capacity_bytes)
    except Exception:
        return 64 * 1024 * 1024  # conservative fallback (v7x per-core VMEM)


def _plan_layout(B: int, D: int):
    """Pick a lane-dense 2-D compute view (R, C) of the (B, D) input.

    If D is smaller than a 128-lane vreg row and divides it, fold 128//D batch
    rows into each lane row so y-stores are unmasked full-lane `vst`s; the
    (1, D) running stats are then tiled 128//D times along lanes by the caller.
    Returns (R, C, reps) with reps = how many times the stats row is tiled.
    """
    if D % 128 == 0:
        return B, D, 1
    if D < 128 and 128 % D == 0 and (B * D) % 128 == 0:
        reps = 128 // D
        return (B * D) // 128, 128, reps
    return B, D, 1


def _pick_tile_rows(R: int, C: int, target_bytes: int = 1 << 20) -> int:
    """Row-tile for the streaming path: ~1 MiB per x tile, prefer exact divisors."""
    per_row = max(C * 4, 1)
    tr = max(8, (target_bytes // per_row) // 8 * 8)
    tr = min(tr, R)
    if tr <= 0 or R % tr == 0:
        return max(tr, 1)
    for cand in range(tr - tr % 8, 7, -8):  # prefer a divisor (no ragged tile)
        if R % cand == 0:
            return cand
    return tr  # ragged last tile handled by masking in the reduce kernel


# ----------------------------------------------------------------------------
# Path A: whole input resident in VMEM (1 HBM read of x, 1 HBM write of y)
# ----------------------------------------------------------------------------
def _resident_kernel(x_ref, mean_ref, sqrs_ref,
                     y_ref, new_mean_ref, new_sqrs_ref,
                     *, decay, max_val, eps, inv_n, training, denorm):
    x = x_ref[...]                                       # (R, C) f32
    m = jnp.float32(decay)

    if training:
        # Fused single-traversal reduction: per-lane (sublane) partial sums,
        # then one lane reduce each.
        col_sum = jnp.sum(x, axis=0, keepdims=True)      # (1, C)
        col_sq = jnp.sum(x * x, axis=0, keepdims=True)   # (1, C)
        batch_mean = jnp.sum(col_sum) * jnp.float32(inv_n)
        batch_sqr = jnp.sum(col_sq) * jnp.float32(inv_n)
        new_mean = m * mean_ref[...] + (1.0 - m) * batch_mean
        new_sqrs = m * sqrs_ref[...] + (1.0 - m) * batch_sqr
    else:
        new_mean = mean_ref[...]
        new_sqrs = sqrs_ref[...]

    new_mean_ref[...] = new_mean
    new_sqrs_ref[...] = new_sqrs

    var = jnp.maximum(new_sqrs - new_mean * new_mean,
                      jnp.float32(1.0 / (max_val * max_val))) + jnp.float32(eps)
    if denorm:
        std = jnp.sqrt(var)                              # (1, C) row: cheap
        y = x * std + new_mean
    else:
        inv_std = jax.lax.rsqrt(var)                     # EUP rsqrt on one row
        y = jnp.clip((x - new_mean) * inv_std, -5.0, 5.0)
    y_ref[...] = y.astype(y_ref.dtype)


def _resident_call(x_c, mean_c, sqrs_c, *, decay, max_val, eps, training,
                   denorm, vmem_limit):
    R, C = x_c.shape
    kernel = functools.partial(
        _resident_kernel, decay=float(decay), max_val=float(max_val),
        eps=float(eps), inv_n=1.0 / float(R * C),
        training=bool(training), denorm=bool(denorm))
    grid_spec = pltpu.PrefetchScalarGridSpec(
        num_scalar_prefetch=0,
        grid=(1,),
        in_specs=[
            pl.BlockSpec((R, C), lambda i: (0, 0)),      # x
            pl.BlockSpec((1, C), lambda i: (0, 0)),      # mean
            pl.BlockSpec((1, C), lambda i: (0, 0)),      # sqrs
        ],
        out_specs=[
            pl.BlockSpec((R, C), lambda i: (0, 0)),      # y
            pl.BlockSpec((1, C), lambda i: (0, 0)),      # new mean
            pl.BlockSpec((1, C), lambda i: (0, 0)),      # new sqrs
        ],
    )
    out_shape = (
        jax.ShapeDtypeStruct((R, C), jnp.float32),
        jax.ShapeDtypeStruct((1, C), jnp.float32),
        jax.ShapeDtypeStruct((1, C), jnp.float32),
    )
    return pl.pallas_call(
        kernel, grid_spec=grid_spec, out_shape=out_shape,
        compiler_params=pltpu.CompilerParams(
            dimension_semantics=("arbitrary",),
            vmem_limit_bytes=vmem_limit),
    )(x_c, mean_c, sqrs_c)


# ----------------------------------------------------------------------------
# Path B: streaming two-pass (reduce over row tiles, then normalize row tiles)
# ----------------------------------------------------------------------------
def _reduce_kernel(x_ref, mean_ref, sqrs_ref,
                   new_mean_ref, new_sqrs_ref, off_ref, scale_ref,
                   sum_ref, sq_ref,
                   *, decay, max_val, eps, inv_n, rows_total, tile_rows, denorm):
    t = pl.program_id(0)

    @pl.when(t == 0)
    def _init():
        sum_ref[...] = jnp.zeros_like(sum_ref)
        sq_ref[...] = jnp.zeros_like(sq_ref)

    x = x_ref[...]                                       # (tile_rows, C)
    if rows_total % tile_rows != 0:
        # Ragged last tile: zero padded rows before accumulating.
        row = t * tile_rows + jax.lax.broadcasted_iota(jnp.int32, x.shape, 0)
        x = jnp.where(row < rows_total, x, 0.0)
    sum_ref[...] += jnp.sum(x, axis=0, keepdims=True)
    sq_ref[...] += jnp.sum(x * x, axis=0, keepdims=True)

    @pl.when(t == pl.num_programs(0) - 1)
    def _finalize():
        m = jnp.float32(decay)
        batch_mean = jnp.sum(sum_ref[...]) * jnp.float32(inv_n)
        batch_sqr = jnp.sum(sq_ref[...]) * jnp.float32(inv_n)
        new_mean = m * mean_ref[...] + (1.0 - m) * batch_mean
        new_sqrs = m * sqrs_ref[...] + (1.0 - m) * batch_sqr
        new_mean_ref[...] = new_mean
        new_sqrs_ref[...] = new_sqrs
        var = jnp.maximum(new_sqrs - new_mean * new_mean,
                          jnp.float32(1.0 / (max_val * max_val))) + jnp.float32(eps)
        off_ref[...] = new_mean
        if denorm:
            scale_ref[...] = jnp.sqrt(var)               # y = x*std + mean
        else:
            scale_ref[...] = jax.lax.rsqrt(var)          # y = (x-mean)*inv_std


def _reduce_call(x_c, mean_c, sqrs_c, *, decay, max_val, eps, denorm,
                 tile_rows, vmem_limit):
    R, C = x_c.shape
    T = -(-R // tile_rows)
    kernel = functools.partial(
        _reduce_kernel, decay=float(decay), max_val=float(max_val),
        eps=float(eps), inv_n=1.0 / float(R * C), rows_total=int(R),
        tile_rows=int(tile_rows), denorm=bool(denorm))
    grid_spec = pltpu.PrefetchScalarGridSpec(
        num_scalar_prefetch=0,
        grid=(T,),
        in_specs=[
            pl.BlockSpec((tile_rows, C), lambda t: (t, 0)),   # x (streamed)
            pl.BlockSpec((1, C), lambda t: (0, 0)),           # mean (resident)
            pl.BlockSpec((1, C), lambda t: (0, 0)),           # sqrs (resident)
        ],
        out_specs=[
            pl.BlockSpec((1, C), lambda t: (0, 0)),           # new mean
            pl.BlockSpec((1, C), lambda t: (0, 0)),           # new sqrs
            pl.BlockSpec((1, C), lambda t: (0, 0)),           # offset
            pl.BlockSpec((1, C), lambda t: (0, 0)),           # scale (inv_std or std)
        ],
        scratch_shapes=[
            pltpu.VMEM((1, C), jnp.float32),                  # running sum(x)
            pltpu.VMEM((1, C), jnp.float32),                  # running sum(x*x)
        ],
    )
    out_shape = tuple(jax.ShapeDtypeStruct((1, C), jnp.float32) for _ in range(4))
    return pl.pallas_call(
        kernel, grid_spec=grid_spec, out_shape=out_shape,
        compiler_params=pltpu.CompilerParams(
            dimension_semantics=("arbitrary",),
            vmem_limit_bytes=vmem_limit),
    )(x_c, mean_c, sqrs_c)


def _normalize_kernel(x_ref, off_ref, scale_ref, y_ref, *, denorm):
    x = x_ref[...]
    if denorm:
        y = x * scale_ref[...] + off_ref[...]
    else:
        y = jnp.clip((x - off_ref[...]) * scale_ref[...], -5.0, 5.0)
    y_ref[...] = y.astype(y_ref.dtype)


def _normalize_call(x_c, off_c, scale_c, *, denorm, tile_rows, vmem_limit):
    R, C = x_c.shape
    T = -(-R // tile_rows)
    kernel = functools.partial(_normalize_kernel, denorm=bool(denorm))
    grid_spec = pltpu.PrefetchScalarGridSpec(
        num_scalar_prefetch=0,
        grid=(T,),
        in_specs=[
            pl.BlockSpec((tile_rows, C), lambda t: (t, 0)),   # x (streamed)
            pl.BlockSpec((1, C), lambda t: (0, 0)),           # offset (resident)
            pl.BlockSpec((1, C), lambda t: (0, 0)),           # scale (resident)
        ],
        out_specs=pl.BlockSpec((tile_rows, C), lambda t: (t, 0)),
    )
    return pl.pallas_call(
        kernel, grid_spec=grid_spec,
        out_shape=jax.ShapeDtypeStruct((R, C), jnp.float32),
        compiler_params=pltpu.CompilerParams(
            dimension_semantics=("parallel",),                # v7x: 2 TCs
            vmem_limit_bytes=vmem_limit),
    )(x_c, off_c, scale_c)


# ----------------------------------------------------------------------------
# Public wrapper
# ----------------------------------------------------------------------------
def generalized_moving_stats_forward(
    x, mean, sqrs, step,
    *, decay=0.99, max_val=100000.0, eps=0.0, training=True, denorm=False,
    force_streaming=False, row_tile=None,
):
    """Forward of GeneralizedMovingStats(impl='mean_std').

    x: (B, D) f32; mean/sqrs: (1, D) or (D,) f32; step: (1,) int32.
    Returns (y, new_mean, new_sqrs, new_step).
    """
    B, D = x.shape
    x = x.astype(jnp.float32)
    mean2 = jnp.asarray(mean, jnp.float32).reshape(1, D)
    sqrs2 = jnp.asarray(sqrs, jnp.float32).reshape(1, D)
    step = jnp.asarray(step, jnp.int32).reshape(1)

    # Lane-dense compute layout (avoids masked stores for small D).
    R, C, reps = _plan_layout(B, D)
    x_c = x if (R, C) == (B, D) else x.reshape(R, C)
    mean_c = mean2 if reps == 1 else jnp.tile(mean2, (1, reps))
    sqrs_c = sqrs2 if reps == 1 else jnp.tile(sqrs2, (1, reps))

    vmem_cap = _vmem_capacity_bytes()
    vmem_limit = int(vmem_cap * 0.75)
    # Resident budget: x + y double-buffered + elementwise temps, with headroom.
    resident_ok = 8 * (R * C * 4) <= int(vmem_cap * 0.5)

    if resident_ok and not force_streaming:
        y_c, new_mean_c, new_sqrs_c = _resident_call(
            x_c, mean_c, sqrs_c, decay=decay, max_val=max_val, eps=eps,
            training=training, denorm=denorm, vmem_limit=vmem_limit)
    else:
        tile_rows = int(row_tile) if row_tile is not None else _pick_tile_rows(R, C)
        tile_rows = max(1, min(tile_rows, R))
        if training:
            new_mean_c, new_sqrs_c, off_c, scale_c = _reduce_call(
                x_c, mean_c, sqrs_c, decay=decay, max_val=max_val, eps=eps,
                denorm=denorm, tile_rows=tile_rows, vmem_limit=vmem_limit)
        else:
            new_mean_c, new_sqrs_c = mean_c, sqrs_c
            var = jnp.maximum(sqrs_c - mean_c * mean_c,
                              1.0 / (max_val * max_val)) + eps
            off_c = mean_c
            scale_c = jnp.sqrt(var) if denorm else jax.lax.rsqrt(var)
        y_c = _normalize_call(x_c, off_c, scale_c, denorm=denorm,
                              tile_rows=tile_rows, vmem_limit=vmem_limit)

    y = y_c if (R, C) == (B, D) else y_c.reshape(B, D)
    new_mean = new_mean_c if reps == 1 else new_mean_c[:, :D]
    new_sqrs = new_sqrs_c if reps == 1 else new_sqrs_c[:, :D]
    new_step = (step + jnp.int32(1)) if training else step
    return y, new_mean, new_sqrs, new_step


# ----------------------------------------------------------------------------
# Pure-JAX reference (faithful translation of the PyTorch module)
# ----------------------------------------------------------------------------
def _reference_forward(x, mean, sqrs, step, *, decay, max_val, eps,
                       training=True, denorm=False):
    if training:
        bm = jnp.mean(x)
        bs = jnp.mean(x * x)
        nm = decay * mean + (1.0 - decay) * bm
        ns = decay * sqrs + (1.0 - decay) * bs
        nstep = step + 1
    else:
        nm, ns, nstep = mean, sqrs, step
    var = ns - nm ** 2
    std = jnp.sqrt(jnp.maximum(var, 1.0 / max_val ** 2) + eps)
    if denorm:
        y = x * std + nm
    else:
        y = jnp.clip((x - nm) / std, -5.0, 5.0)
    return y, nm, ns, nstep


if __name__ == "__main__":
    decay, max_val, eps = 0.99, 100000.0, 0.0
    key = jax.random.PRNGKey(0)
    k1, k2 = jax.random.split(key)

    # --- Case 1: small input -> VMEM-resident path + lane-dense relayout (D=32)
    B, D = 8, 32
    x = jax.random.normal(k1, (B, D), dtype=jnp.float32) * 3.0 + 1.5
    mean = jnp.zeros((1, D), jnp.float32)      # torch __init__: zeros(insize)
    sqrs = jnp.zeros((1, D), jnp.float32)
    step = jnp.ones((1,), jnp.int32)

    out = generalized_moving_stats_forward(
        x, mean, sqrs, step, decay=decay, max_val=max_val, eps=eps,
        training=True, denorm=False)
    jax.block_until_ready(out)
    y, nm, ns, nstep = out
    y_r, nm_r, ns_r, nstep_r = _reference_forward(
        x, mean, sqrs, step, decay=decay, max_val=max_val, eps=eps)
    np.testing.assert_allclose(np.asarray(y), np.asarray(y_r), rtol=1e-5, atol=1e-5)
    np.testing.assert_allclose(np.asarray(nm), np.asarray(nm_r), rtol=1e-5, atol=1e-6)
    np.testing.assert_allclose(np.asarray(ns), np.asarray(ns_r), rtol=1e-5, atol=1e-6)
    np.testing.assert_array_equal(np.asarray(nstep), np.asarray(nstep_r))

    # --- Case 2: forced streaming path (pipelined reduce + "parallel" normalize)
    B2, D2 = 1024, 128
    x2 = jax.random.normal(k2, (B2, D2), dtype=jnp.float32) * 2.0 - 0.5
    mean2 = jnp.full((1, D2), 0.25, jnp.float32)
    sqrs2 = jnp.full((1, D2), 1.5, jnp.float32)
    step2 = jnp.array([3], jnp.int32)

    out2 = generalized_moving_stats_forward(
        x2, mean2, sqrs2, step2, decay=decay, max_val=max_val, eps=eps,
        training=True, denorm=False, force_streaming=True, row_tile=256)
    jax.block_until_ready(out2)
    y2, nm2, ns2, nstep2 = out2
    y2_r, nm2_r, ns2_r, nstep2_r = _reference_forward(
        x2, mean2, sqrs2, step2, decay=decay, max_val=max_val, eps=eps)
    np.testing.assert_allclose(np.asarray(y2), np.asarray(y2_r), rtol=1e-5, atol=1e-5)
    np.testing.assert_allclose(np.asarray(nm2), np.asarray(nm2_r), rtol=1e-5, atol=1e-6)
    np.testing.assert_allclose(np.asarray(ns2), np.asarray(ns2_r), rtol=1e-5, atol=1e-6)
    np.testing.assert_array_equal(np.asarray(nstep2), np.asarray(nstep2_r))

    print("KERNEL_OK")
</pallas_src>

<mosaic_0001>
module attributes {stable_mosaic.version = 11 : i64} {
  func.func @_resident_kernel(%arg0: i32, %arg1: memref<2x128xf32, #tpu.memory_space<vmem>>, %arg2: memref<1x128xf32, #tpu.memory_space<vmem>>, %arg3: memref<1x128xf32, #tpu.memory_space<vmem>>, %arg4: memref<2x128xf32, #tpu.memory_space<vmem>>, %arg5: memref<1x128xf32, #tpu.memory_space<vmem>>, %arg6: memref<1x128xf32, #tpu.memory_space<vmem>>) attributes {dimension_semantics = [#tpu.dimension_semantics<arbitrary>], iteration_bounds = array<i64: 1>, scalar_prefetch = 0 : i64, scratch_operands = 0 : i64, tpu.core_type = #tpu.core_type<tc>, window_params = [{pipeline_mode = #tpu.pipeline_mode<synchronous>, transform_indices = @transform_0, window_bounds = array<i64: 2, 128>}, {pipeline_mode = #tpu.pipeline_mode<synchronous>, transform_indices = @transform_1, window_bounds = array<i64: 1, 128>}, {pipeline_mode = #tpu.pipeline_mode<synchronous>, transform_indices = @transform_2, window_bounds = array<i64: 1, 128>}, {pipeline_mode = #tpu.pipeline_mode<synchronous>, transform_indices = @transform_3, window_bounds = array<i64: 2, 128>}, {pipeline_mode = #tpu.pipeline_mode<synchronous>, transform_indices = @transform_4, window_bounds = array<i64: 1, 128>}, {pipeline_mode = #tpu.pipeline_mode<synchronous>, transform_indices = @transform_5, window_bounds = array<i64: 1, 128>}]} {
    %c0 = arith.constant 0 : index
    %c0_0 = arith.constant 0 : index
    %0 = vector.load %arg1[%c0, %c0_0] : memref<2x128xf32, #tpu.memory_space<vmem>>, vector<2x128xf32>
    %cst = arith.constant dense<0.000000e+00> : vector<128xf32>
    %1 = vector.multi_reduction <add>, %0, %cst [0] : vector<2x128xf32> to vector<128xf32>
    %2 = vector.shape_cast %1 : vector<128xf32> to vector<1x128xf32>
    %3 = arith.mulf %0, %0 : vector<2x128xf32>
    %cst_1 = arith.constant dense<0.000000e+00> : vector<128xf32>
    %4 = vector.multi_reduction <add>, %3, %cst_1 [0] : vector<2x128xf32> to vector<128xf32>
    %5 = vector.shape_cast %4 : vector<128xf32> to vector<1x128xf32>
    %6 = vector.shape_cast %2 : vector<1x128xf32> to vector<1x1x128xf32>
    %cst_2 = arith.constant dense<0.000000e+00> : vector<1xf32>
    %7 = vector.multi_reduction <add>, %6, %cst_2 [1, 2] : vector<1x1x128xf32> to vector<1xf32>
    %8 = vector.shape_cast %7 : vector<1xf32> to vector<1x1x1xf32>
    %9 = vector.extract %8[0, 0, 0] : f32 from vector<1x1x1xf32>
    %cst_3 = arith.constant 3.906250e-03 : f32
    %10 = arith.mulf %9, %cst_3 : f32
    %11 = vector.shape_cast %5 : vector<1x128xf32> to vector<1x1x128xf32>
    %cst_4 = arith.constant dense<0.000000e+00> : vector<1xf32>
    %12 = vector.multi_reduction <add>, %11, %cst_4 [1, 2] : vector<1x1x128xf32> to vector<1xf32>
    %13 = vector.shape_cast %12 : vector<1xf32> to vector<1x1x1xf32>
    %14 = vector.extract %13[0, 0, 0] : f32 from vector<1x1x1xf32>
    %cst_5 = arith.constant 3.906250e-03 : f32
    %15 = arith.mulf %14, %cst_5 : f32
    %c0_6 = arith.constant 0 : index
    %c0_7 = arith.constant 0 : index
    %16 = vector.load %arg2[%c0_6, %c0_7] : memref<1x128xf32, #tpu.memory_space<vmem>>, vector<1x128xf32>
    %cst_8 = arith.constant 9.900000e-01 : f32
    %17 = vector.broadcast %cst_8 : f32 to vector<1x128xf32>
    %18 = arith.mulf %17, %16 : vector<1x128xf32>
    %cst_9 = arith.constant 1.000000e+00 : f32
    %cst_10 = arith.constant 9.900000e-01 : f32
    %19 = arith.subf %cst_9, %cst_10 : f32
    %20 = arith.mulf %19, %10 : f32
    %21 = vector.broadcast %20 : f32 to vector<1x128xf32>
    %22 = arith.addf %18, %21 : vector<1x128xf32>
    %c0_11 = arith.constant 0 : index
    %c0_12 = arith.constant 0 : index
    %23 = vector.load %arg3[%c0_11, %c0_12] : memref<1x128xf32, #tpu.memory_space<vmem>>, vector<1x128xf32>
    %cst_13 = arith.constant 9.900000e-01 : f32
    %24 = vector.broadcast %cst_13 : f32 to vector<1x128xf32>
    %25 = arith.mulf %24, %23 : vector<1x128xf32>
    %cst_14 = arith.constant 1.000000e+00 : f32
    %cst_15 = arith.constant 9.900000e-01 : f32
    %26 = arith.subf %cst_14, %cst_15 : f32
    %27 = arith.mulf %26, %15 : f32
    %28 = vector.broadcast %27 : f32 to vector<1x128xf32>
    %29 = arith.addf %25, %28 : vector<1x128xf32>
    %c0_16 = arith.constant 0 : index
    %c0_17 = arith.constant 0 : index
    %30 = vector.load %arg5[%c0_16, %c0_17] : memref<1x128xf32, #tpu.memory_space<vmem>>, vector<1x128xf32>
    tpu.vector_store %arg5[%c0_16, %c0_17], %22 {strides = array<i32>} : memref<1x128xf32, #tpu.memory_space<vmem>>, vector<1x128xf32>,
    %c0_18 = arith.constant 0 : index
    %c0_19 = arith.constant 0 : index
    %31 = vector.load %arg6[%c0_18, %c0_19] : memref<1x128xf32, #tpu.memory_space<vmem>>, vector<1x128xf32>
    tpu.vector_store %arg6[%c0_18, %c0_19], %29 {strides = array<i32>} : memref<1x128xf32, #tpu.memory_space<vmem>>, vector<1x128xf32>,
    %32 = arith.mulf %22, %22 : vector<1x128xf32>
    %33 = arith.subf %29, %32 : vector<1x128xf32>
    %cst_20 = arith.constant 1.000000e-10 : f32
    %34 = vector.broadcast %cst_20 : f32 to vector<1x128xf32>
    %35 = arith.maximumf %33, %34 : vector<1x128xf32>
    %cst_21 = arith.constant 0.000000e+00 : f32
    %36 = vector.broadcast %cst_21 : f32 to vector<1x128xf32>
    %37 = arith.addf %35, %36 : vector<1x128xf32>
    %38 = math.rsqrt %37 : vector<1x128xf32>
    %39 = vector.broadcast %22 : vector<1x128xf32> to vector<2x128xf32>
    %40 = arith.subf %0, %39 : vector<2x128xf32>
    %41 = vector.broadcast %38 : vector<1x128xf32> to vector<2x128xf32>
    %42 = arith.mulf %40, %41 : vector<2x128xf32>
    %cst_22 = arith.constant -5.000000e+00 : f32
    %cst_23 = arith.constant 5.000000e+00 : f32
    %43 = vector.broadcast %cst_22 : f32 to vector<2x128xf32>
    %44 = arith.maximumf %43, %42 : vector<2x128xf32>
    %45 = vector.broadcast %cst_23 : f32 to vector<2x128xf32>
    %46 = arith.minimumf %45, %44 : vector<2x128xf32>
    %c0_24 = arith.constant 0 : index
    %c0_25 = arith.constant 0 : index
    %47 = vector.load %arg4[%c0_24, %c0_25] : memref<2x128xf32, #tpu.memory_space<vmem>>, vector<2x128xf32>
    tpu.vector_store %arg4[%c0_24, %c0_25], %46 {strides = array<i32>} : memref<2x128xf32, #tpu.memory_space<vmem>>, vector<2x128xf32>,
    return
  }
  func.func @transform_0(%arg0: i32) -> (i32, i32) {
    %c0_i32 = arith.constant 0 : i32
    %c0_i32_0 = arith.constant 0 : i32
    %c0_i32_1 = arith.constant 0 : i32
    return %c0_i32, %c0_i32_0 : i32, i32
  }
  func.func @transform_1(%arg0: i32) -> (i32, i32) {
    %c0_i32 = arith.constant 0 : i32
    %c0_i32_0 = arith.constant 0 : i32
    %c0_i32_1 = arith.constant 0 : i32
    return %c0_i32, %c0_i32_0 : i32, i32
  }
  func.func @transform_2(%arg0: i32) -> (i32, i32) {
    %c0_i32 = arith.constant 0 : i32
    %c0_i32_0 = arith.constant 0 : i32
    %c0_i32_1 = arith.constant 0 : i32
    return %c0_i32, %c0_i32_0 : i32, i32
  }
  func.func @transform_3(%arg0: i32) -> (i32, i32) {
    %c0_i32 = arith.constant 0 : i32
    %c0_i32_0 = arith.constant 0 : i32
    %c0_i32_1 = arith.constant 0 : i32
    return %c0_i32, %c0_i32_0 : i32, i32
  }
  func.func @transform_4(%arg0: i32) -> (i32, i32) {
    %c0_i32 = arith.constant 0 : i32
    %c0_i32_0 = arith.constant 0 : i32
    %c0_i32_1 = arith.constant 0 : i32
    return %c0_i32, %c0_i32_0 : i32, i32
  }
  func.func @transform_5(%arg0: i32) -> (i32, i32) {
    %c0_i32 = arith.constant 0 : i32
    %c0_i32_0 = arith.constant 0 : i32
    %c0_i32_1 = arith.constant 0 : i32
    return %c0_i32, %c0_i32_0 : i32, i32
  }
}

</mosaic_0001>

<llo_original>
// kernel: tpu_custom_call.1
$region0: #{tpu_custom_call.1}
  #allocation0 [shape = 'u32[]', space=smem, size = 0x4, offset = 0x4, fixed_abs, tag = 'smem constant byte address 0x4 - core index']
  #allocation1 [shape = 'u32[144,128]{1,0:T(1,128)}', space=vmem, size = 0x12000, scoped, tag = 'internal scratch']
  %s0 = inlined_call_operand.hbm [shape: f32[2,128], index: 0, kind: input, shape index: {}]
  %s1 = inlined_call_operand.vmem [shape: f32[1,128], index: 1, kind: input, shape index: {}]
  %s2 = inlined_call_operand.vmem [shape: f32[1,128], index: 2, kind: input, shape index: {}]
  %s3 = inlined_call_operand.hbm [shape: f32[2,128], index: 3, kind: output, shape index: {0}]
  %s4 = inlined_call_operand.hbm [shape: f32[1,128], index: 4, kind: output, shape index: {1}]
  %s5 = inlined_call_operand.hbm [shape: f32[1,128], index: 5, kind: output, shape index: {2}]
  %6 = xla_tuple %s3, %s4, %s5
  %s7 = sld [smem:[#allocation0]]
  $region42: #{tpu_custom_call.1} parent=0
    _
  %s9 = ssub.s32 1, %s7
  %s10 = scalar_select 0, %s9, %s7
  $region1: #{tpu_custom_call.1} parent=0
    #allocation2 [shape = 'u8[1024]{0}', space=vmem, size = 0x400, scoped, tag = 'input window, operand 0, single buffered']
    #allocation3 [shape = 's32[1]{0}', space=sflag, size = 0x4, scoped, tag = 'scoped memory for tpu_custom_call.1']
    #allocation4 [shape = 's32[1]{0}', space=sflag, size = 0x4, scoped, tag = 'scoped memory for tpu_custom_call.1']
    #allocation5 [shape = 'u8[1024]{0}', space=vmem, size = 0x400, scoped, tag = 'output window, operand 0, single buffered']
    #allocation6 [shape = 'u8[512]{0}', space=vmem, size = 0x400, scoped, tag = 'output window, operand 1, single buffered']
    #allocation7 [shape = 's32[1]{0}', space=sflag, size = 0x4, scoped, tag = 'scoped memory for tpu_custom_call.1']
    #allocation8 [shape = 'u8[512]{0}', space=vmem, size = 0x400, scoped, tag = 'output window, operand 2, single buffered']
    %11 = vsyncpa [#allocation3], 0
    %12 = vsyncpa [#allocation4], 0
    %13 = vsyncpa [#allocation7], 0
    // Predicated region
    $region2: #{tpu_custom_call.1} parent=1 // pred_check
      _
    $region3: #{tpu_custom_call.1} parent=1 // pred_check_branch
      %15 = sbr.rel (0) target = $region5
    $region4: #{tpu_custom_call.1} parent=1 // pred_region
      %s17 = ssub.s32 32, 32
      %18 = vsyncadd [#allocation3], %s17
      %s20 = sshll.u32 [#allocation2], 4
      %s21 = int_to_ptr.vmem [resolvable:$true] %s20
      %23 = dma.hbm_to_vmem [thread:$0]  %s0, 32, %s21, [#allocation3]
    $region5: #{tpu_custom_call.1} parent=1 // pred_fallthru
      _
    // Predicated region
    $region6: #{tpu_custom_call.1} parent=1 // pred_check
      _
    $region7: #{tpu_custom_call.1} parent=1 // pred_check_branch
      %25 = sbr.rel (0) target = $region9
    $region8: #{tpu_custom_call.1} parent=1 // pred_region
      _
    $region9: #{tpu_custom_call.1} parent=1 // pred_fallthru
      _
    // Predicated region
    $region10: #{tpu_custom_call.1} parent=1 // pred_check
      _
    $region11: #{tpu_custom_call.1} parent=1 // pred_check_branch
      %27 = sbr.rel (0) target = $region13
    $region12: #{tpu_custom_call.1} parent=1 // pred_region
      _
    $region13: #{tpu_custom_call.1} parent=1 // pred_fallthru
      _
    // Predicated region
    $region14: #{tpu_custom_call.1} parent=1 // pred_check
      _
    $region15: #{tpu_custom_call.1} parent=1 // pred_check_branch
      %29 = sbr.rel (0) target = $region17
    $region16: #{tpu_custom_call.1} parent=1 // pred_region
      %30 = dma.done [#allocation3], 32
    $region17: #{tpu_custom_call.1} parent=1 // pred_fallthru
      _
    %v31 = vld [vmem:[#allocation2] sm:$0x3]
    %vm32 = vcmask 1041408
    %v33 = vsel %vm32, %v31, 0.0
    %v34 = vrot.slane %v33, 4
    %v35 = vadd.f32 %v33, %v34
    %v36 = vrot.slane %v35, 2
    %v37 = vadd.f32 %v35, %v36
    %v38 = vrot.slane %v37, 1
    %v39 = vadd.f32 %v37, %v38
    %v40 = vmul.f32 %v31, %v31
    %v41 = vsel %vm32, %v40, 0.0
    %v42 = vrot.slane %v41, 4
    %v43 = vadd.f32 %v41, %v42
    %v44 = vrot.slane %v43, 2
    %v45 = vadd.f32 %v43, %v44
    %v46 = vrot.slane %v45, 1
    %v47 = vadd.f32 %v45, %v46
    %vm48 = vcmask 1040384
    %v49 = vsel %vm48, %v39, 0.0
    %50 = vadd.xlane.f32.xlu0 %v49
    %v51 = vpop.xlane.xlu0 %50
    %v52 = vrot.slane %v51, 4
    %v53 = vadd.f32 %v51, %v52
    %v54 = vrot.slane %v53, 2
    %v55 = vadd.f32 %v53, %v54
    %v56 = vrot.slane %v55, 1
    %v57 = vadd.f32 %v55, %v56
    %s58 = vtos %v57
    %s59 = smul.f32 %s58, 0.00390625
    %v60 = vsel %vm48, %v47, 0.0
    %61 = vadd.xlane.f32.xlu0 %v60
    %v62 = vpop.xlane.xlu0 %61
    %v63 = vrot.slane %v62, 4
    %v64 = vadd.f32 %v62, %v63
    %v65 = vrot.slane %v64, 2
    %v66 = vadd.f32 %v64, %v65
    %v67 = vrot.slane %v66, 1
    %v68 = vadd.f32 %v66, %v67
    %s69 = vtos %v68
    %s70 = smul.f32 %s69, 0.00390625
    %v71 = vld [vmem:[%s1] sm:$0x1]
    %v72 = vmul.f32 %v71, 0.99
    %s73 = smul.f32 %s59, 0.00999999
    %v74 = vstv %s73
    %v75 = vadd.f32 %v72, %v74
    %v76 = vld [vmem:[%s2] sm:$0x1]
    %v77 = vmul.f32 %v76, 0.99
    %s78 = smul.f32 %s70, 0.00999999
    %v79 = vstv %s78
    %v80 = vadd.f32 %v77, %v79
    %81 = vst [vmem:[#allocation6] sm:$0x1] %v75
    %82 = vst [vmem:[#allocation8] sm:$0x1] %v80
    %v83 = vmul.f32 %v75, %v75
    %v84 = vsub.f32 %v80, %v83
    %v85 = vmax.f32 %v84, 1e-10
    %v86 = vadd.f32 %v85, 0.0
    %v87 = vrsqrt.pop %v86
    %v89 = vlaneseq
    %v90 = vshrl.u32 %v89, 7
    %v91 = vsub.s32 0, %v90
    %v92 = vrot.slane %v75, %v91
    %v94 = vsub.f32 %v31, %v92
    %v96 = vlaneseq
    %v97 = vshrl.u32 %v96, 7
    %v98 = vsub.s32 0, %v97
    %v99 = vrot.slane %v87, %v98
    %v101 = vmul.f32 %v94, %v99
    %v102 = vmax.f32 %v101, -5.0
    %v103 = vmin.f32 %v102, 5.0
    %104 = vst [vmem:[#allocation5] sm:$0x3] %v103
    // Predicated region
    $region18: #{tpu_custom_call.1} parent=1 // pred_check
      _
    $region19: #{tpu_custom_call.1} parent=1 // pred_check_branch
      %106 = sbr.rel (0) target = $region21
    $region20: #{tpu_custom_call.1} parent=1 // pred_region
      %s108 = ssub.s32 32, 32
      %109 = vsyncadd [#allocation4], %s108
      %s111 = sshll.u32 [#allocation5], 4
      %s112 = int_to_ptr.vmem [resolvable:$true] %s111
      %114 = dma.vmem_to_hbm [thread:$0]  %s112, 32, %s3, [#allocation4]
    $region21: #{tpu_custom_call.1} parent=1 // pred_fallthru
      _
    // Predicated region
    $region22: #{tpu_custom_call.1} parent=1 // pred_check
      _
    $region23: #{tpu_custom_call.1} parent=1 // pred_check_branch
      %116 = sbr.rel (0) target = $region25
    $region24: #{tpu_custom_call.1} parent=1 // pred_region
      %s118 = ssub.s32 16, 16
      %119 = vsyncadd [#allocation7], %s118
      %s121 = sshll.u32 [#allocation6], 4
      %s122 = int_to_ptr.vmem [resolvable:$true] %s121
      %124 = dma.vmem_to_hbm [thread:$0]  %s122, 16, %s4, [#allocation7]
    $region25: #{tpu_custom_call.1} parent=1 // pred_fallthru
      _
    // Predicated region
    $region26: #{tpu_custom_call.1} parent=1 // pred_check
      _
    $region27: #{tpu_custom_call.1} parent=1 // pred_check_branch
      %126 = sbr.rel (0) target = $region29
    $region28: #{tpu_custom_call.1} parent=1 // pred_region
      %s128 = ssub.s32 16, 16
      %129 = vsyncadd [#allocation7], %s128
      %s131 = sshll.u32 [#allocation8], 4
      %s132 = int_to_ptr.vmem [resolvable:$true] %s131
      %134 = dma.vmem_to_hbm [thread:$0]  %s132, 16, %s5, [#allocation7]
    $region29: #{tpu_custom_call.1} parent=1 // pred_fallthru
      _
    // Predicated region
    $region30: #{tpu_custom_call.1} parent=1 // pred_check
      _
    $region31: #{tpu_custom_call.1} parent=1 // pred_check_branch
      %136 = sbr.rel (0) target = $region33
    $region32: #{tpu_custom_call.1} parent=1 // pred_region
      %137 = dma.done [#allocation4], 32
    $region33: #{tpu_custom_call.1} parent=1 // pred_fallthru
      _
    // Predicated region
    $region34: #{tpu_custom_call.1} parent=1 // pred_check
      _
    $region35: #{tpu_custom_call.1} parent=1 // pred_check_branch
      %139 = sbr.rel (0) target = $region37
    $region36: #{tpu_custom_call.1} parent=1 // pred_region
      %140 = dma.done [#allocation7], 16
    $region37: #{tpu_custom_call.1} parent=1 // pred_fallthru
      _
    // Predicated region
    $region38: #{tpu_custom_call.1} parent=1 // pred_check
      _
    $region39: #{tpu_custom_call.1} parent=1 // pred_check_branch
      %142 = sbr.rel (0) target = $region41
    $region40: #{tpu_custom_call.1} parent=1 // pred_region
      %143 = dma.done [#allocation7], 16
    $region41: #{tpu_custom_call.1} parent=1 // pred_fallthru
      _
    %144 = vsyncpa [#allocation3], 1
    %145 = vsyncpa [#allocation4], 1
    %146 = vsyncpa [#allocation7], 1

</llo_original>
